<compile_context>
chip_gen: v6e
topology: v6e:2x2x1
jax: 0.10.0
libtpu: 0.0.40
codegen_flags: <defaults>
</compile_context>

<pallas_src>
import functools

import jax
import jax.numpy as jnp
from jax.experimental import pallas as pl
from jax.experimental.pallas import tpu as pltpu


_C_UNROLL = 16  # unroll channel loops in Python only for small C


def _round_up(x, m):
    return (x + m - 1) // m * m


def _spatial_attn_kernel(w_ref, b_ref, x_ref, o_ref, pad_max_ref, pad_mean_ref,
                         *, ks, pad):
    """Fused ChannelPool + Conv2d(2->1, ks, pad) + sigmoid + rescale.

    w_ref: (2*ks*ks,) f32 SMEM (scalar prefetch) — [max-channel taps, mean-channel taps]
    b_ref: (1,)       f32 SMEM (scalar prefetch) — conv bias
    x_ref: (1, C, H, W) VMEM block (one batch element)
    o_ref: (1, C, H, W) VMEM block
    pad_max_ref / pad_mean_ref: (H+2P, Wp) f32 VMEM scratch (zero-padded pooled maps)
    """
    C = x_ref.shape[1]
    H = x_ref.shape[2]
    W = x_ref.shape[3]
    P = pad

    # ---- ChannelPool: max & mean over C ------------------------------------
    x0 = x_ref[0, 0].astype(jnp.float32)
    if C <= _C_UNROLL:
        xc_max = x0
        xc_sum = x0
        for c in range(1, C):
            xc = x_ref[0, c].astype(jnp.float32)
            xc_max = jnp.maximum(xc_max, xc)
            xc_sum = xc_sum + xc
    else:
        def pool_body(c, carry):
            m, s = carry
            xc = x_ref[0, c].astype(jnp.float32)
            return jnp.maximum(m, xc), s + xc
        xc_max, xc_sum = jax.lax.fori_loop(1, C, pool_body, (x0, x0), unroll=4)
    xc_mean = xc_sum * (1.0 / C)

    # ---- Stage zero-padded pooled maps in VMEM scratch ----------------------
    # Re-zero every grid step: the halo / lane padding must be zero and scratch
    # persists across grid iterations (each TC has its own copy under megacore).
    pad_max_ref[...] = jnp.zeros_like(pad_max_ref)
    pad_mean_ref[...] = jnp.zeros_like(pad_mean_ref)
    pad_max_ref[pl.ds(P, H), pl.ds(P, W)] = xc_max
    pad_mean_ref[pl.ds(P, H), pl.ds(P, W)] = xc_mean

    # ---- ks x ks conv (2 -> 1 channel), stride 1, zero padding P ------------
    # Each tap = static shifted slice read of the padded scratch + scalar FMA.
    # No rolls, no boundary masks, no iota temporaries.
    acc = jnp.full((H, W), b_ref[0], jnp.float32)
    for ky in range(ks):
        for kx in range(ks):
            w_max = w_ref[ky * ks + kx]
            w_mean = w_ref[ks * ks + ky * ks + kx]
            acc = acc + w_max * pad_max_ref[pl.ds(ky, H), pl.ds(kx, W)]
            acc = acc + w_mean * pad_mean_ref[pl.ds(ky, H), pl.ds(kx, W)]

    # ---- sigmoid gate + broadcast rescale of x -------------------------------
    # sigmoid(z) = 0.5 * tanh(0.5*z) + 0.5: transcendental on the EUP slot,
    # no exact f32 divide burning VPU cycles, full f32 accuracy.
    scale = 0.5 * jnp.tanh(0.5 * acc) + 0.5
    if C <= _C_UNROLL:
        for c in range(C):
            o_ref[0, c] = (x_ref[0, c].astype(jnp.float32) * scale).astype(o_ref.dtype)
    else:
        def rescale_body(c, _):
            o_ref[0, c] = (x_ref[0, c].astype(jnp.float32) * scale).astype(o_ref.dtype)
            return 0
        jax.lax.fori_loop(0, C, rescale_body, 0, unroll=4)


def spatial_attn_forward(x, w, b, kernel_size=5):
    """x * sigmoid(Conv2d(2,1,ks,pad=(ks-1)//2)(cat(max_c(x), mean_c(x)))).

    x: (N, C, H, W)   w: (1, 2, ks, ks)   b: (1,)
    """
    N, C, H, W = x.shape
    ks = kernel_size
    P = (ks - 1) // 2
    assert w.shape == (1, 2, ks, ks), w.shape

    Wp = _round_up(W + 2 * P, 128)           # lane-multiple padded scratch width

    w_flat = w.reshape(2 * ks * ks).astype(jnp.float32)   # [max taps, mean taps]
    b_flat = jnp.asarray(b).reshape(1).astype(jnp.float32)

    kernel = functools.partial(_spatial_attn_kernel, ks=ks, pad=P)

    # Explicit VMEM budget: double-buffered (1,C,H,W) in + out, two padded
    # scratch planes, plus margin. Capped at v7x physical VMEM (64 MiB).
    itemsize = jnp.dtype(x.dtype).itemsize
    block_bytes = C * H * W * itemsize
    scratch_bytes = 2 * (H + 2 * P) * Wp * 4
    vmem_limit = int(min(max(4 * block_bytes + scratch_bytes + (4 << 20), 32 << 20),
                         64 << 20))

    return pl.pallas_call(
        kernel,
        out_shape=jax.ShapeDtypeStruct((N, C, H, W), x.dtype),
        grid_spec=pltpu.PrefetchScalarGridSpec(
            num_scalar_prefetch=2,                      # conv weights + bias -> SMEM once
            grid=(N,),
            in_specs=[
                pl.BlockSpec((1, C, H, W), lambda n, w_ref, b_ref: (n, 0, 0, 0)),
            ],
            out_specs=pl.BlockSpec((1, C, H, W), lambda n, w_ref, b_ref: (n, 0, 0, 0)),
            scratch_shapes=[
                pltpu.VMEM((H + 2 * P, Wp), jnp.float32),   # padded max-pool plane
                pltpu.VMEM((H + 2 * P, Wp), jnp.float32),   # padded mean-pool plane
            ],
        ),
        compiler_params=pltpu.CompilerParams(
            dimension_semantics=("parallel",),
            vmem_limit_bytes=vmem_limit,
        ),
    )(w_flat, b_flat, x)


def _reference(x, w, b, kernel_size=5):
    """Pure-JAX reference matching the PyTorch module (NCHW)."""
    p = (kernel_size - 1) // 2
    xc = jnp.concatenate(
        [jnp.max(x, axis=1, keepdims=True), jnp.mean(x, axis=1, keepdims=True)],
        axis=1)                                                     # (N, 2, H, W)
    y = jax.lax.conv_general_dilated(
        xc.astype(jnp.float32), w.astype(jnp.float32),
        window_strides=(1, 1), padding=((p, p), (p, p)),
        dimension_numbers=("NCHW", "OIHW", "NCHW"))
    y = y + b.reshape(1, -1, 1, 1)
    scale = jax.nn.sigmoid(y)
    return x * scale


if __name__ == "__main__":
    key = jax.random.PRNGKey(0)
    kx, kw, kb = jax.random.split(key, 3)

    N, C, H, W = 2, 4, 16, 16
    KS = 5

    x = jax.random.normal(kx, (N, C, H, W), dtype=jnp.float32)
    w = 0.2 * jax.random.normal(kw, (1, 2, KS, KS), dtype=jnp.float32)
    b = 0.1 * jax.random.normal(kb, (1,), dtype=jnp.float32)

    y = spatial_attn_forward(x, w, b, kernel_size=KS)
    y = jax.block_until_ready(y)

    y_ref = _reference(x, w, b, kernel_size=KS)
    assert y.shape == (N, C, H, W), y.shape
    assert jnp.allclose(y, y_ref, atol=1e-4, rtol=1e-4), \
        float(jnp.max(jnp.abs(y - y_ref)))

    print("KERNEL_OK")
</pallas_src>

<mosaic_0001>
module attributes {stable_mosaic.version = 11 : i64} {
  func.func @_spatial_attn_kernel(%arg0: i32, %arg1: memref<50xf32, #tpu.memory_space<smem>>, %arg2: memref<1xf32, #tpu.memory_space<smem>>, %arg3: memref<1x4x16x16xf32, #tpu.memory_space<vmem>>, %arg4: memref<1x4x16x16xf32, #tpu.memory_space<vmem>>, %arg5: memref<20x128xf32, #tpu.memory_space<vmem>>, %arg6: memref<20x128xf32, #tpu.memory_space<vmem>>) attributes {dimension_semantics = [#tpu.dimension_semantics<parallel>], iteration_bounds = array<i64: 2>, scalar_prefetch = 2 : i64, scratch_operands = 2 : i64, tpu.core_type = #tpu.core_type<tc>, window_params = [{transform_indices = @transform_0, window_bounds = array<i64: 1, 4, 16, 16>}, {transform_indices = @transform_1, window_bounds = array<i64: 1, 4, 16, 16>}]} {
    %c0 = arith.constant 0 : index
    %c0_0 = arith.constant 0 : index
    %c0_1 = arith.constant 0 : index
    %c0_2 = arith.constant 0 : index
    %0 = vector.load %arg3[%c0, %c0_0, %c0_1, %c0_2] : memref<1x4x16x16xf32, #tpu.memory_space<vmem>>, vector<1x1x16x16xf32>
    %1 = vector.shape_cast %0 : vector<1x1x16x16xf32> to vector<16x16xf32>
    %c0_3 = arith.constant 0 : index
    %c1 = arith.constant 1 : index
    %c0_4 = arith.constant 0 : index
    %c0_5 = arith.constant 0 : index
    %2 = vector.load %arg3[%c0_3, %c1, %c0_4, %c0_5] : memref<1x4x16x16xf32, #tpu.memory_space<vmem>>, vector<1x1x16x16xf32>
    %3 = vector.shape_cast %2 : vector<1x1x16x16xf32> to vector<16x16xf32>
    %4 = arith.maximumf %1, %3 : vector<16x16xf32>
    %5 = arith.addf %1, %3 : vector<16x16xf32>
    %c0_6 = arith.constant 0 : index
    %c2 = arith.constant 2 : index
    %c0_7 = arith.constant 0 : index
    %c0_8 = arith.constant 0 : index
    %6 = vector.load %arg3[%c0_6, %c2, %c0_7, %c0_8] : memref<1x4x16x16xf32, #tpu.memory_space<vmem>>, vector<1x1x16x16xf32>
    %7 = vector.shape_cast %6 : vector<1x1x16x16xf32> to vector<16x16xf32>
    %8 = arith.maximumf %4, %7 : vector<16x16xf32>
    %9 = arith.addf %5, %7 : vector<16x16xf32>
    %c0_9 = arith.constant 0 : index
    %c3 = arith.constant 3 : index
    %c0_10 = arith.constant 0 : index
    %c0_11 = arith.constant 0 : index
    %10 = vector.load %arg3[%c0_9, %c3, %c0_10, %c0_11] : memref<1x4x16x16xf32, #tpu.memory_space<vmem>>, vector<1x1x16x16xf32>
    %11 = vector.shape_cast %10 : vector<1x1x16x16xf32> to vector<16x16xf32>
    %12 = arith.maximumf %8, %11 : vector<16x16xf32>
    %13 = arith.addf %9, %11 : vector<16x16xf32>
    %cst = arith.constant 2.500000e-01 : f32
    %14 = vector.broadcast %cst : f32 to vector<16x16xf32>
    %15 = arith.mulf %13, %14 : vector<16x16xf32>
    %cst_12 = arith.constant 0.000000e+00 : f32
    %16 = vector.broadcast %cst_12 : f32 to vector<20x128xf32>
    %c0_13 = arith.constant 0 : index
    %c0_14 = arith.constant 0 : index
    %17 = vector.load %arg5[%c0_13, %c0_14] : memref<20x128xf32, #tpu.memory_space<vmem>>, vector<20x128xf32>
    tpu.vector_store %arg5[%c0_13, %c0_14], %16 {strides = array<i32>} : memref<20x128xf32, #tpu.memory_space<vmem>>, vector<20x128xf32>,
    %cst_15 = arith.constant 0.000000e+00 : f32
    %18 = vector.broadcast %cst_15 : f32 to vector<20x128xf32>
    %c0_16 = arith.constant 0 : index
    %c0_17 = arith.constant 0 : index
    %19 = vector.load %arg6[%c0_16, %c0_17] : memref<20x128xf32, #tpu.memory_space<vmem>>, vector<20x128xf32>
    tpu.vector_store %arg6[%c0_16, %c0_17], %18 {strides = array<i32>} : memref<20x128xf32, #tpu.memory_space<vmem>>, vector<20x128xf32>,
    %c2_18 = arith.constant 2 : index
    %c2_19 = arith.constant 2 : index
    %20 = vector.load %arg5[%c2_18, %c2_19] : memref<20x128xf32, #tpu.memory_space<vmem>>, vector<16x16xf32>
    tpu.vector_store %arg5[%c2_18, %c2_19], %12 {strides = array<i32>} : memref<20x128xf32, #tpu.memory_space<vmem>>, vector<16x16xf32>,
    %c2_20 = arith.constant 2 : index
    %c2_21 = arith.constant 2 : index
    %21 = vector.load %arg6[%c2_20, %c2_21] : memref<20x128xf32, #tpu.memory_space<vmem>>, vector<16x16xf32>
    tpu.vector_store %arg6[%c2_20, %c2_21], %15 {strides = array<i32>} : memref<20x128xf32, #tpu.memory_space<vmem>>, vector<16x16xf32>,
    %c0_22 = arith.constant 0 : index
    %22 = memref.load %arg2[%c0_22] : memref<1xf32, #tpu.memory_space<smem>>
    %23 = vector.broadcast %22 : f32 to vector<16x16xf32>
    %c0_23 = arith.constant 0 : index
    %24 = memref.load %arg1[%c0_23] : memref<50xf32, #tpu.memory_space<smem>>
    %c25 = arith.constant 25 : index
    %25 = memref.load %arg1[%c25] : memref<50xf32, #tpu.memory_space<smem>>
    %c0_24 = arith.constant 0 : index
    %c0_25 = arith.constant 0 : index
    %26 = vector.load %arg5[%c0_24, %c0_25] : memref<20x128xf32, #tpu.memory_space<vmem>>, vector<16x16xf32>
    %27 = vector.broadcast %24 : f32 to vector<16x16xf32>
    %28 = arith.mulf %27, %26 : vector<16x16xf32>
    %29 = arith.addf %23, %28 : vector<16x16xf32>
    %c0_26 = arith.constant 0 : index
    %c0_27 = arith.constant 0 : index
    %30 = vector.load %arg6[%c0_26, %c0_27] : memref<20x128xf32, #tpu.memory_space<vmem>>, vector<16x16xf32>
    %31 = vector.broadcast %25 : f32 to vector<16x16xf32>
    %32 = arith.mulf %31, %30 : vector<16x16xf32>
    %33 = arith.addf %29, %32 : vector<16x16xf32>
    %c1_28 = arith.constant 1 : index
    %34 = memref.load %arg1[%c1_28] : memref<50xf32, #tpu.memory_space<smem>>
    %c26 = arith.constant 26 : index
    %35 = memref.load %arg1[%c26] : memref<50xf32, #tpu.memory_space<smem>>
    %c0_29 = arith.constant 0 : index
    %c1_30 = arith.constant 1 : index
    %36 = vector.load %arg5[%c0_29, %c1_30] : memref<20x128xf32, #tpu.memory_space<vmem>>, vector<16x16xf32>
    %37 = vector.broadcast %34 : f32 to vector<16x16xf32>
    %38 = arith.mulf %37, %36 : vector<16x16xf32>
    %39 = arith.addf %33, %38 : vector<16x16xf32>
    %c0_31 = arith.constant 0 : index
    %c1_32 = arith.constant 1 : index
    %40 = vector.load %arg6[%c0_31, %c1_32] : memref<20x128xf32, #tpu.memory_space<vmem>>, vector<16x16xf32>
    %41 = vector.broadcast %35 : f32 to vector<16x16xf32>
    %42 = arith.mulf %41, %40 : vector<16x16xf32>
    %43 = arith.addf %39, %42 : vector<16x16xf32>
    %c2_33 = arith.constant 2 : index
    %44 = memref.load %arg1[%c2_33] : memref<50xf32, #tpu.memory_space<smem>>
    %c27 = arith.constant 27 : index
    %45 = memref.load %arg1[%c27] : memref<50xf32, #tpu.memory_space<smem>>
    %c0_34 = arith.constant 0 : index
    %c2_35 = arith.constant 2 : index
    %46 = vector.load %arg5[%c0_34, %c2_35] : memref<20x128xf32, #tpu.memory_space<vmem>>, vector<16x16xf32>
    %47 = vector.broadcast %44 : f32 to vector<16x16xf32>
    %48 = arith.mulf %47, %46 : vector<16x16xf32>
    %49 = arith.addf %43, %48 : vector<16x16xf32>
    %c0_36 = arith.constant 0 : index
    %c2_37 = arith.constant 2 : index
    %50 = vector.load %arg6[%c0_36, %c2_37] : memref<20x128xf32, #tpu.memory_space<vmem>>, vector<16x16xf32>
    %51 = vector.broadcast %45 : f32 to vector<16x16xf32>
    %52 = arith.mulf %51, %50 : vector<16x16xf32>
    %53 = arith.addf %49, %52 : vector<16x16xf32>
    %c3_38 = arith.constant 3 : index
    %54 = memref.load %arg1[%c3_38] : memref<50xf32, #tpu.memory_space<smem>>
    %c28 = arith.constant 28 : index
    %55 = memref.load %arg1[%c28] : memref<50xf32, #tpu.memory_space<smem>>
    %c0_39 = arith.constant 0 : index
    %c3_40 = arith.constant 3 : index
    %56 = vector.load %arg5[%c0_39, %c3_40] : memref<20x128xf32, #tpu.memory_space<vmem>>, vector<16x16xf32>
    %57 = vector.broadcast %54 : f32 to vector<16x16xf32>
    %58 = arith.mulf %57, %56 : vector<16x16xf32>
    %59 = arith.addf %53, %58 : vector<16x16xf32>
    %c0_41 = arith.constant 0 : index
    %c3_42 = arith.constant 3 : index
    %60 = vector.load %arg6[%c0_41, %c3_42] : memref<20x128xf32, #tpu.memory_space<vmem>>, vector<16x16xf32>
    %61 = vector.broadcast %55 : f32 to vector<16x16xf32>
    %62 = arith.mulf %61, %60 : vector<16x16xf32>
    %63 = arith.addf %59, %62 : vector<16x16xf32>
    %c4 = arith.constant 4 : index
    %64 = memref.load %arg1[%c4] : memref<50xf32, #tpu.memory_space<smem>>
    %c29 = arith.constant 29 : index
    %65 = memref.load %arg1[%c29] : memref<50xf32, #tpu.memory_space<smem>>
    %c0_43 = arith.constant 0 : index
    %c4_44 = arith.constant 4 : index
    %66 = vector.load %arg5[%c0_43, %c4_44] : memref<20x128xf32, #tpu.memory_space<vmem>>, vector<16x16xf32>
    %67 = vector.broadcast %64 : f32 to vector<16x16xf32>
    %68 = arith.mulf %67, %66 : vector<16x16xf32>
    %69 = arith.addf %63, %68 : vector<16x16xf32>
    %c0_45 = arith.constant 0 : index
    %c4_46 = arith.constant 4 : index
    %70 = vector.load %arg6[%c0_45, %c4_46] : memref<20x128xf32, #tpu.memory_space<vmem>>, vector<16x16xf32>
    %71 = vector.broadcast %65 : f32 to vector<16x16xf32>
    %72 = arith.mulf %71, %70 : vector<16x16xf32>
    %73 = arith.addf %69, %72 : vector<16x16xf32>
    %c5 = arith.constant 5 : index
    %74 = memref.load %arg1[%c5] : memref<50xf32, #tpu.memory_space<smem>>
    %c30 = arith.constant 30 : index
    %75 = memref.load %arg1[%c30] : memref<50xf32, #tpu.memory_space<smem>>
    %c1_47 = arith.constant 1 : index
    %c0_48 = arith.constant 0 : index
    %76 = vector.load %arg5[%c1_47, %c0_48] : memref<20x128xf32, #tpu.memory_space<vmem>>, vector<16x16xf32>
    %77 = vector.broadcast %74 : f32 to vector<16x16xf32>
    %78 = arith.mulf %77, %76 : vector<16x16xf32>
    %79 = arith.addf %73, %78 : vector<16x16xf32>
    %c1_49 = arith.constant 1 : index
    %c0_50 = arith.constant 0 : index
    %80 = vector.load %arg6[%c1_49, %c0_50] : memref<20x128xf32, #tpu.memory_space<vmem>>, vector<16x16xf32>
    %81 = vector.broadcast %75 : f32 to vector<16x16xf32>
    %82 = arith.mulf %81, %80 : vector<16x16xf32>
    %83 = arith.addf %79, %82 : vector<16x16xf32>
    %c6 = arith.constant 6 : index
    %84 = memref.load %arg1[%c6] : memref<50xf32, #tpu.memory_space<smem>>
    %c31 = arith.constant 31 : index
    %85 = memref.load %arg1[%c31] : memref<50xf32, #tpu.memory_space<smem>>
    %c1_51 = arith.constant 1 : index
    %c1_52 = arith.constant 1 : index
    %86 = vector.load %arg5[%c1_51, %c1_52] : memref<20x128xf32, #tpu.memory_space<vmem>>, vector<16x16xf32>
    %87 = vector.broadcast %84 : f32 to vector<16x16xf32>
    %88 = arith.mulf %87, %86 : vector<16x16xf32>
    %89 = arith.addf %83, %88 : vector<16x16xf32>
    %c1_53 = arith.constant 1 : index
    %c1_54 = arith.constant 1 : index
    %90 = vector.load %arg6[%c1_53, %c1_54] : memref<20x128xf32, #tpu.memory_space<vmem>>, vector<16x16xf32>
    %91 = vector.broadcast %85 : f32 to vector<16x16xf32>
    %92 = arith.mulf %91, %90 : vector<16x16xf32>
    %93 = arith.addf %89, %92 : vector<16x16xf32>
    %c7 = arith.constant 7 : index
    %94 = memref.load %arg1[%c7] : memref<50xf32, #tpu.memory_space<smem>>
    %c32 = arith.constant 32 : index
    %95 = memref.load %arg1[%c32] : memref<50xf32, #tpu.memory_space<smem>>
    %c1_55 = arith.constant 1 : index
    %c2_56 = arith.constant 2 : index
    %96 = vector.load %arg5[%c1_55, %c2_56] : memref<20x128xf32, #tpu.memory_space<vmem>>, vector<16x16xf32>
    %97 = vector.broadcast %94 : f32 to vector<16x16xf32>
    %98 = arith.mulf %97, %96 : vector<16x16xf32>
    %99 = arith.addf %93, %98 : vector<16x16xf32>
    %c1_57 = arith.constant 1 : index
    %c2_58 = arith.constant 2 : index
    %100 = vector.load %arg6[%c1_57, %c2_58] : memref<20x128xf32, #tpu.memory_space<vmem>>, vector<16x16xf32>
    %101 = vector.broadcast %95 : f32 to vector<16x16xf32>
    %102 = arith.mulf %101, %100 : vector<16x16xf32>
    %103 = arith.addf %99, %102 : vector<16x16xf32>
    %c8 = arith.constant 8 : index
    %104 = memref.load %arg1[%c8] : memref<50xf32, #tpu.memory_space<smem>>
    %c33 = arith.constant 33 : index
    %105 = memref.load %arg1[%c33] : memref<50xf32, #tpu.memory_space<smem>>
    %c1_59 = arith.constant 1 : index
    %c3_60 = arith.constant 3 : index
    %106 = vector.load %arg5[%c1_59, %c3_60] : memref<20x128xf32, #tpu.memory_space<vmem>>, vector<16x16xf32>
    %107 = vector.broadcast %104 : f32 to vector<16x16xf32>
    %108 = arith.mulf %107, %106 : vector<16x16xf32>
    %109 = arith.addf %103, %108 : vector<16x16xf32>
    %c1_61 = arith.constant 1 : index
    %c3_62 = arith.constant 3 : index
    %110 = vector.load %arg6[%c1_61, %c3_62] : memref<20x128xf32, #tpu.memory_space<vmem>>, vector<16x16xf32>
    %111 = vector.broadcast %105 : f32 to vector<16x16xf32>
    %112 = arith.mulf %111, %110 : vector<16x16xf32>
    %113 = arith.addf %109, %112 : vector<16x16xf32>
    %c9 = arith.constant 9 : index
    %114 = memref.load %arg1[%c9] : memref<50xf32, #tpu.memory_space<smem>>
    %c34 = arith.constant 34 : index
    %115 = memref.load %arg1[%c34] : memref<50xf32, #tpu.memory_space<smem>>
    %c1_63 = arith.constant 1 : index
    %c4_64 = arith.constant 4 : index
    %116 = vector.load %arg5[%c1_63, %c4_64] : memref<20x128xf32, #tpu.memory_space<vmem>>, vector<16x16xf32>
    %117 = vector.broadcast %114 : f32 to vector<16x16xf32>
    %118 = arith.mulf %117, %116 : vector<16x16xf32>
    %119 = arith.addf %113, %118 : vector<16x16xf32>
    %c1_65 = arith.constant 1 : index
    %c4_66 = arith.constant 4 : index
    %120 = vector.load %arg6[%c1_65, %c4_66] : memref<20x128xf32, #tpu.memory_space<vmem>>, vector<16x16xf32>
    %121 = vector.broadcast %115 : f32 to vector<16x16xf32>
    %122 = arith.mulf %121, %120 : vector<16x16xf32>
    %123 = arith.addf %119, %122 : vector<16x16xf32>
    %c10 = arith.constant 10 : index
    %124 = memref.load %arg1[%c10] : memref<50xf32, #tpu.memory_space<smem>>
    %c35 = arith.constant 35 : index
    %125 = memref.load %arg1[%c35] : memref<50xf32, #tpu.memory_space<smem>>
    %c2_67 = arith.constant 2 : index
    %c0_68 = arith.constant 0 : index
    %126 = vector.load %arg5[%c2_67, %c0_68] : memref<20x128xf32, #tpu.memory_space<vmem>>, vector<16x16xf32>
    %127 = vector.broadcast %124 : f32 to vector<16x16xf32>
    %128 = arith.mulf %127, %126 : vector<16x16xf32>
    %129 = arith.addf %123, %128 : vector<16x16xf32>
    %c2_69 = arith.constant 2 : index
    %c0_70 = arith.constant 0 : index
    %130 = vector.load %arg6[%c2_69, %c0_70] : memref<20x128xf32, #tpu.memory_space<vmem>>, vector<16x16xf32>
    %131 = vector.broadcast %125 : f32 to vector<16x16xf32>
    %132 = arith.mulf %131, %130 : vector<16x16xf32>
    %133 = arith.addf %129, %132 : vector<16x16xf32>
    %c11 = arith.constant 11 : index
    %134 = memref.load %arg1[%c11] : memref<50xf32, #tpu.memory_space<smem>>
    %c36 = arith.constant 36 : index
    %135 = memref.load %arg1[%c36] : memref<50xf32, #tpu.memory_space<smem>>
    %c2_71 = arith.constant 2 : index
    %c1_72 = arith.constant 1 : index
    %136 = vector.load %arg5[%c2_71, %c1_72] : memref<20x128xf32, #tpu.memory_space<vmem>>, vector<16x16xf32>
    %137 = vector.broadcast %134 : f32 to vector<16x16xf32>
    %138 = arith.mulf %137, %136 : vector<16x16xf32>
    %139 = arith.addf %133, %138 : vector<16x16xf32>
    %c2_73 = arith.constant 2 : index
    %c1_74 = arith.constant 1 : index
    %140 = vector.load %arg6[%c2_73, %c1_74] : memref<20x128xf32, #tpu.memory_space<vmem>>, vector<16x16xf32>
    %141 = vector.broadcast %135 : f32 to vector<16x16xf32>
    %142 = arith.mulf %141, %140 : vector<16x16xf32>
    %143 = arith.addf %139, %142 : vector<16x16xf32>
    %c12 = arith.constant 12 : index
    %144 = memref.load %arg1[%c12] : memref<50xf32, #tpu.memory_space<smem>>
    %c37 = arith.constant 37 : index
    %145 = memref.load %arg1[%c37] : memref<50xf32, #tpu.memory_space<smem>>
    %c2_75 = arith.constant 2 : index
    %c2_76 = arith.constant 2 : index
    %146 = vector.load %arg5[%c2_75, %c2_76] : memref<20x128xf32, #tpu.memory_space<vmem>>, vector<16x16xf32>
    %147 = vector.broadcast %144 : f32 to vector<16x16xf32>
    %148 = arith.mulf %147, %146 : vector<16x16xf32>
    %149 = arith.addf %143, %148 : vector<16x16xf32>
    %c2_77 = arith.constant 2 : index
    %c2_78 = arith.constant 2 : index
    %150 = vector.load %arg6[%c2_77, %c2_78] : memref<20x128xf32, #tpu.memory_space<vmem>>, vector<16x16xf32>
    %151 = vector.broadcast %145 : f32 to vector<16x16xf32>
    %152 = arith.mulf %151, %150 : vector<16x16xf32>
    %153 = arith.addf %149, %152 : vector<16x16xf32>
    %c13 = arith.constant 13 : index
    %154 = memref.load %arg1[%c13] : memref<50xf32, #tpu.memory_space<smem>>
    %c38 = arith.constant 38 : index
    %155 = memref.load %arg1[%c38] : memref<50xf32, #tpu.memory_space<smem>>
    %c2_79 = arith.constant 2 : index
    %c3_80 = arith.constant 3 : index
    %156 = vector.load %arg5[%c2_79, %c3_80] : memref<20x128xf32, #tpu.memory_space<vmem>>, vector<16x16xf32>
    %157 = vector.broadcast %154 : f32 to vector<16x16xf32>
    %158 = arith.mulf %157, %156 : vector<16x16xf32>
    %159 = arith.addf %153, %158 : vector<16x16xf32>
    %c2_81 = arith.constant 2 : index
    %c3_82 = arith.constant 3 : index
    %160 = vector.load %arg6[%c2_81, %c3_82] : memref<20x128xf32, #tpu.memory_space<vmem>>, vector<16x16xf32>
    %161 = vector.broadcast %155 : f32 to vector<16x16xf32>
    %162 = arith.mulf %161, %160 : vector<16x16xf32>
    %163 = arith.addf %159, %162 : vector<16x16xf32>
    %c14 = arith.constant 14 : index
    %164 = memref.load %arg1[%c14] : memref<50xf32, #tpu.memory_space<smem>>
    %c39 = arith.constant 39 : index
    %165 = memref.load %arg1[%c39] : memref<50xf32, #tpu.memory_space<smem>>
    %c2_83 = arith.constant 2 : index
    %c4_84 = arith.constant 4 : index
    %166 = vector.load %arg5[%c2_83, %c4_84] : memref<20x128xf32, #tpu.memory_space<vmem>>, vector<16x16xf32>
    %167 = vector.broadcast %164 : f32 to vector<16x16xf32>
    %168 = arith.mulf %167, %166 : vector<16x16xf32>
    %169 = arith.addf %163, %168 : vector<16x16xf32>
    %c2_85 = arith.constant 2 : index
    %c4_86 = arith.constant 4 : index
    %170 = vector.load %arg6[%c2_85, %c4_86] : memref<20x128xf32, #tpu.memory_space<vmem>>, vector<16x16xf32>
    %171 = vector.broadcast %165 : f32 to vector<16x16xf32>
    %172 = arith.mulf %171, %170 : vector<16x16xf32>
    %173 = arith.addf %169, %172 : vector<16x16xf32>
    %c15 = arith.constant 15 : index
    %174 = memref.load %arg1[%c15] : memref<50xf32, #tpu.memory_space<smem>>
    %c40 = arith.constant 40 : index
    %175 = memref.load %arg1[%c40] : memref<50xf32, #tpu.memory_space<smem>>
    %c3_87 = arith.constant 3 : index
    %c0_88 = arith.constant 0 : index
    %176 = vector.load %arg5[%c3_87, %c0_88] : memref<20x128xf32, #tpu.memory_space<vmem>>, vector<16x16xf32>
    %177 = vector.broadcast %174 : f32 to vector<16x16xf32>
    %178 = arith.mulf %177, %176 : vector<16x16xf32>
    %179 = arith.addf %173, %178 : vector<16x16xf32>
    %c3_89 = arith.constant 3 : index
    %c0_90 = arith.constant 0 : index
    %180 = vector.load %arg6[%c3_89, %c0_90] : memref<20x128xf32, #tpu.memory_space<vmem>>, vector<16x16xf32>
    %181 = vector.broadcast %175 : f32 to vector<16x16xf32>
    %182 = arith.mulf %181, %180 : vector<16x16xf32>
    %183 = arith.addf %179, %182 : vector<16x16xf32>
    %c16 = arith.constant 16 : index
    %184 = memref.load %arg1[%c16] : memref<50xf32, #tpu.memory_space<smem>>
    %c41 = arith.constant 41 : index
    %185 = memref.load %arg1[%c41] : memref<50xf32, #tpu.memory_space<smem>>
    %c3_91 = arith.constant 3 : index
    %c1_92 = arith.constant 1 : index
    %186 = vector.load %arg5[%c3_91, %c1_92] : memref<20x128xf32, #tpu.memory_space<vmem>>, vector<16x16xf32>
    %187 = vector.broadcast %184 : f32 to vector<16x16xf32>
    %188 = arith.mulf %187, %186 : vector<16x16xf32>
    %189 = arith.addf %183, %188 : vector<16x16xf32>
    %c3_93 = arith.constant 3 : index
    %c1_94 = arith.constant 1 : index
    %190 = vector.load %arg6[%c3_93, %c1_94] : memref<20x128xf32, #tpu.memory_space<vmem>>, vector<16x16xf32>
    %191 = vector.broadcast %185 : f32 to vector<16x16xf32>
    %192 = arith.mulf %191, %190 : vector<16x16xf32>
    %193 = arith.addf %189, %192 : vector<16x16xf32>
    %c17 = arith.constant 17 : index
    %194 = memref.load %arg1[%c17] : memref<50xf32, #tpu.memory_space<smem>>
    %c42 = arith.constant 42 : index
    %195 = memref.load %arg1[%c42] : memref<50xf32, #tpu.memory_space<smem>>
    %c3_95 = arith.constant 3 : index
    %c2_96 = arith.constant 2 : index
    %196 = vector.load %arg5[%c3_95, %c2_96] : memref<20x128xf32, #tpu.memory_space<vmem>>, vector<16x16xf32>
    %197 = vector.broadcast %194 : f32 to vector<16x16xf32>
    %198 = arith.mulf %197, %196 : vector<16x16xf32>
    %199 = arith.addf %193, %198 : vector<16x16xf32>
    %c3_97 = arith.constant 3 : index
    %c2_98 = arith.constant 2 : index
    %200 = vector.load %arg6[%c3_97, %c2_98] : memref<20x128xf32, #tpu.memory_space<vmem>>, vector<16x16xf32>
    %201 = vector.broadcast %195 : f32 to vector<16x16xf32>
    %202 = arith.mulf %201, %200 : vector<16x16xf32>
    %203 = arith.addf %199, %202 : vector<16x16xf32>
    %c18 = arith.constant 18 : index
    %204 = memref.load %arg1[%c18] : memref<50xf32, #tpu.memory_space<smem>>
    %c43 = arith.constant 43 : index
    %205 = memref.load %arg1[%c43] : memref<50xf32, #tpu.memory_space<smem>>
    %c3_99 = arith.constant 3 : index
    %c3_100 = arith.constant 3 : index
    %206 = vector.load %arg5[%c3_99, %c3_100] : memref<20x128xf32, #tpu.memory_space<vmem>>, vector<16x16xf32>
    %207 = vector.broadcast %204 : f32 to vector<16x16xf32>
    %208 = arith.mulf %207, %206 : vector<16x16xf32>
    %209 = arith.addf %203, %208 : vector<16x16xf32>
    %c3_101 = arith.constant 3 : index
    %c3_102 = arith.constant 3 : index
    %210 = vector.load %arg6[%c3_101, %c3_102] : memref<20x128xf32, #tpu.memory_space<vmem>>, vector<16x16xf32>
    %211 = vector.broadcast %205 : f32 to vector<16x16xf32>
    %212 = arith.mulf %211, %210 : vector<16x16xf32>
    %213 = arith.addf %209, %212 : vector<16x16xf32>
    %c19 = arith.constant 19 : index
    %214 = memref.load %arg1[%c19] : memref<50xf32, #tpu.memory_space<smem>>
    %c44 = arith.constant 44 : index
    %215 = memref.load %arg1[%c44] : memref<50xf32, #tpu.memory_space<smem>>
    %c3_103 = arith.constant 3 : index
    %c4_104 = arith.constant 4 : index
    %216 = vector.load %arg5[%c3_103, %c4_104] : memref<20x128xf32, #tpu.memory_space<vmem>>, vector<16x16xf32>
    %217 = vector.broadcast %214 : f32 to vector<16x16xf32>
    %218 = arith.mulf %217, %216 : vector<16x16xf32>
    %219 = arith.addf %213, %218 : vector<16x16xf32>
    %c3_105 = arith.constant 3 : index
    %c4_106 = arith.constant 4 : index
    %220 = vector.load %arg6[%c3_105, %c4_106] : memref<20x128xf32, #tpu.memory_space<vmem>>, vector<16x16xf32>
    %221 = vector.broadcast %215 : f32 to vector<16x16xf32>
    %222 = arith.mulf %221, %220 : vector<16x16xf32>
    %223 = arith.addf %219, %222 : vector<16x16xf32>
    %c20 = arith.constant 20 : index
    %224 = memref.load %arg1[%c20] : memref<50xf32, #tpu.memory_space<smem>>
    %c45 = arith.constant 45 : index
    %225 = memref.load %arg1[%c45] : memref<50xf32, #tpu.memory_space<smem>>
    %c4_107 = arith.constant 4 : index
    %c0_108 = arith.constant 0 : index
    %226 = vector.load %arg5[%c4_107, %c0_108] : memref<20x128xf32, #tpu.memory_space<vmem>>, vector<16x16xf32>
    %227 = vector.broadcast %224 : f32 to vector<16x16xf32>
    %228 = arith.mulf %227, %226 : vector<16x16xf32>
    %229 = arith.addf %223, %228 : vector<16x16xf32>
    %c4_109 = arith.constant 4 : index
    %c0_110 = arith.constant 0 : index
    %230 = vector.load %arg6[%c4_109, %c0_110] : memref<20x128xf32, #tpu.memory_space<vmem>>, vector<16x16xf32>
    %231 = vector.broadcast %225 : f32 to vector<16x16xf32>
    %232 = arith.mulf %231, %230 : vector<16x16xf32>
    %233 = arith.addf %229, %232 : vector<16x16xf32>
    %c21 = arith.constant 21 : index
    %234 = memref.load %arg1[%c21] : memref<50xf32, #tpu.memory_space<smem>>
    %c46 = arith.constant 46 : index
    %235 = memref.load %arg1[%c46] : memref<50xf32, #tpu.memory_space<smem>>
    %c4_111 = arith.constant 4 : index
    %c1_112 = arith.constant 1 : index
    %236 = vector.load %arg5[%c4_111, %c1_112] : memref<20x128xf32, #tpu.memory_space<vmem>>, vector<16x16xf32>
    %237 = vector.broadcast %234 : f32 to vector<16x16xf32>
    %238 = arith.mulf %237, %236 : vector<16x16xf32>
    %239 = arith.addf %233, %238 : vector<16x16xf32>
    %c4_113 = arith.constant 4 : index
    %c1_114 = arith.constant 1 : index
    %240 = vector.load %arg6[%c4_113, %c1_114] : memref<20x128xf32, #tpu.memory_space<vmem>>, vector<16x16xf32>
    %241 = vector.broadcast %235 : f32 to vector<16x16xf32>
    %242 = arith.mulf %241, %240 : vector<16x16xf32>
    %243 = arith.addf %239, %242 : vector<16x16xf32>
    %c22 = arith.constant 22 : index
    %244 = memref.load %arg1[%c22] : memref<50xf32, #tpu.memory_space<smem>>
    %c47 = arith.constant 47 : index
    %245 = memref.load %arg1[%c47] : memref<50xf32, #tpu.memory_space<smem>>
    %c4_115 = arith.constant 4 : index
    %c2_116 = arith.constant 2 : index
    %246 = vector.load %arg5[%c4_115, %c2_116] : memref<20x128xf32, #tpu.memory_space<vmem>>, vector<16x16xf32>
    %247 = vector.broadcast %244 : f32 to vector<16x16xf32>
    %248 = arith.mulf %247, %246 : vector<16x16xf32>
    %249 = arith.addf %243, %248 : vector<16x16xf32>
    %c4_117 = arith.constant 4 : index
    %c2_118 = arith.constant 2 : index
    %250 = vector.load %arg6[%c4_117, %c2_118] : memref<20x128xf32, #tpu.memory_space<vmem>>, vector<16x16xf32>
    %251 = vector.broadcast %245 : f32 to vector<16x16xf32>
    %252 = arith.mulf %251, %250 : vector<16x16xf32>
    %253 = arith.addf %249, %252 : vector<16x16xf32>
    %c23 = arith.constant 23 : index
    %254 = memref.load %arg1[%c23] : memref<50xf32, #tpu.memory_space<smem>>
    %c48 = arith.constant 48 : index
    %255 = memref.load %arg1[%c48] : memref<50xf32, #tpu.memory_space<smem>>
    %c4_119 = arith.constant 4 : index
    %c3_120 = arith.constant 3 : index
    %256 = vector.load %arg5[%c4_119, %c3_120] : memref<20x128xf32, #tpu.memory_space<vmem>>, vector<16x16xf32>
    %257 = vector.broadcast %254 : f32 to vector<16x16xf32>
    %258 = arith.mulf %257, %256 : vector<16x16xf32>
    %259 = arith.addf %253, %258 : vector<16x16xf32>
    %c4_121 = arith.constant 4 : index
    %c3_122 = arith.constant 3 : index
    %260 = vector.load %arg6[%c4_121, %c3_122] : memref<20x128xf32, #tpu.memory_space<vmem>>, vector<16x16xf32>
    %261 = vector.broadcast %255 : f32 to vector<16x16xf32>
    %262 = arith.mulf %261, %260 : vector<16x16xf32>
    %263 = arith.addf %259, %262 : vector<16x16xf32>
    %c24 = arith.constant 24 : index
    %264 = memref.load %arg1[%c24] : memref<50xf32, #tpu.memory_space<smem>>
    %c49 = arith.constant 49 : index
    %265 = memref.load %arg1[%c49] : memref<50xf32, #tpu.memory_space<smem>>
    %c4_123 = arith.constant 4 : index
    %c4_124 = arith.constant 4 : index
    %266 = vector.load %arg5[%c4_123, %c4_124] : memref<20x128xf32, #tpu.memory_space<vmem>>, vector<16x16xf32>
    %267 = vector.broadcast %264 : f32 to vector<16x16xf32>
    %268 = arith.mulf %267, %266 : vector<16x16xf32>
    %269 = arith.addf %263, %268 : vector<16x16xf32>
    %c4_125 = arith.constant 4 : index
    %c4_126 = arith.constant 4 : index
    %270 = vector.load %arg6[%c4_125, %c4_126] : memref<20x128xf32, #tpu.memory_space<vmem>>, vector<16x16xf32>
    %271 = vector.broadcast %265 : f32 to vector<16x16xf32>
    %272 = arith.mulf %271, %270 : vector<16x16xf32>
    %273 = arith.addf %269, %272 : vector<16x16xf32>
    %cst_127 = arith.constant 5.000000e-01 : f32
    %274 = vector.broadcast %cst_127 : f32 to vector<16x16xf32>
    %275 = arith.mulf %274, %273 : vector<16x16xf32>
    %276 = math.tanh %275 : vector<16x16xf32>
    %cst_128 = arith.constant 5.000000e-01 : f32
    %277 = vector.broadcast %cst_128 : f32 to vector<16x16xf32>
    %278 = arith.mulf %277, %276 : vector<16x16xf32>
    %cst_129 = arith.constant 5.000000e-01 : f32
    %279 = vector.broadcast %cst_129 : f32 to vector<16x16xf32>
    %280 = arith.addf %278, %279 : vector<16x16xf32>
    %c0_130 = arith.constant 0 : index
    %c0_131 = arith.constant 0 : index
    %c0_132 = arith.constant 0 : index
    %c0_133 = arith.constant 0 : index
    %281 = vector.load %arg3[%c0_130, %c0_131, %c0_132, %c0_133] : memref<1x4x16x16xf32, #tpu.memory_space<vmem>>, vector<1x1x16x16xf32>
    %282 = vector.shape_cast %281 : vector<1x1x16x16xf32> to vector<16x16xf32>
    %283 = arith.mulf %282, %280 : vector<16x16xf32>
    %c0_134 = arith.constant 0 : index
    %c0_135 = arith.constant 0 : index
    %c0_136 = arith.constant 0 : index
    %c0_137 = arith.constant 0 : index
    %284 = vector.load %arg4[%c0_134, %c0_135, %c0_136, %c0_137] : memref<1x4x16x16xf32, #tpu.memory_space<vmem>>, vector<1x1x16x16xf32>
    %285 = vector.shape_cast %284 : vector<1x1x16x16xf32> to vector<16x16xf32>
    %286 = vector.shape_cast %283 : vector<16x16xf32> to vector<1x1x16x16xf32>
    tpu.vector_store %arg4[%c0_134, %c0_135, %c0_136, %c0_137], %286 {strides = array<i32>} : memref<1x4x16x16xf32, #tpu.memory_space<vmem>>, vector<1x1x16x16xf32>,
    %c0_138 = arith.constant 0 : index
    %c1_139 = arith.constant 1 : index
    %c0_140 = arith.constant 0 : index
    %c0_141 = arith.constant 0 : index
    %287 = vector.load %arg3[%c0_138, %c1_139, %c0_140, %c0_141] : memref<1x4x16x16xf32, #tpu.memory_space<vmem>>, vector<1x1x16x16xf32>
    %288 = vector.shape_cast %287 : vector<1x1x16x16xf32> to vector<16x16xf32>
    %289 = arith.mulf %288, %280 : vector<16x16xf32>
    %c0_142 = arith.constant 0 : index
    %c1_143 = arith.constant 1 : index
    %c0_144 = arith.constant 0 : index
    %c0_145 = arith.constant 0 : index
    %290 = vector.load %arg4[%c0_142, %c1_143, %c0_144, %c0_145] : memref<1x4x16x16xf32, #tpu.memory_space<vmem>>, vector<1x1x16x16xf32>
    %291 = vector.shape_cast %290 : vector<1x1x16x16xf32> to vector<16x16xf32>
    %292 = vector.shape_cast %289 : vector<16x16xf32> to vector<1x1x16x16xf32>
    tpu.vector_store %arg4[%c0_142, %c1_143, %c0_144, %c0_145], %292 {strides = array<i32>} : memref<1x4x16x16xf32, #tpu.memory_space<vmem>>, vector<1x1x16x16xf32>,
    %c0_146 = arith.constant 0 : index
    %c2_147 = arith.constant 2 : index
    %c0_148 = arith.constant 0 : index
    %c0_149 = arith.constant 0 : index
    %293 = vector.load %arg3[%c0_146, %c2_147, %c0_148, %c0_149] : memref<1x4x16x16xf32, #tpu.memory_space<vmem>>, vector<1x1x16x16xf32>
    %294 = vector.shape_cast %293 : vector<1x1x16x16xf32> to vector<16x16xf32>
    %295 = arith.mulf %294, %280 : vector<16x16xf32>
    %c0_150 = arith.constant 0 : index
    %c2_151 = arith.constant 2 : index
    %c0_152 = arith.constant 0 : index
    %c0_153 = arith.constant 0 : index
    %296 = vector.load %arg4[%c0_150, %c2_151, %c0_152, %c0_153] : memref<1x4x16x16xf32, #tpu.memory_space<vmem>>, vector<1x1x16x16xf32>
    %297 = vector.shape_cast %296 : vector<1x1x16x16xf32> to vector<16x16xf32>
    %298 = vector.shape_cast %295 : vector<16x16xf32> to vector<1x1x16x16xf32>
    tpu.vector_store %arg4[%c0_150, %c2_151, %c0_152, %c0_153], %298 {strides = array<i32>} : memref<1x4x16x16xf32, #tpu.memory_space<vmem>>, vector<1x1x16x16xf32>,
    %c0_154 = arith.constant 0 : index
    %c3_155 = arith.constant 3 : index
    %c0_156 = arith.constant 0 : index
    %c0_157 = arith.constant 0 : index
    %299 = vector.load %arg3[%c0_154, %c3_155, %c0_156, %c0_157] : memref<1x4x16x16xf32, #tpu.memory_space<vmem>>, vector<1x1x16x16xf32>
    %300 = vector.shape_cast %299 : vector<1x1x16x16xf32> to vector<16x16xf32>
    %301 = arith.mulf %300, %280 : vector<16x16xf32>
    %c0_158 = arith.constant 0 : index
    %c3_159 = arith.constant 3 : index
    %c0_160 = arith.constant 0 : index
    %c0_161 = arith.constant 0 : index
    %302 = vector.load %arg4[%c0_158, %c3_159, %c0_160, %c0_161] : memref<1x4x16x16xf32, #tpu.memory_space<vmem>>, vector<1x1x16x16xf32>
    %303 = vector.shape_cast %302 : vector<1x1x16x16xf32> to vector<16x16xf32>
    %304 = vector.shape_cast %301 : vector<16x16xf32> to vector<1x1x16x16xf32>
    tpu.vector_store %arg4[%c0_158, %c3_159, %c0_160, %c0_161], %304 {strides = array<i32>} : memref<1x4x16x16xf32, #tpu.memory_space<vmem>>, vector<1x1x16x16xf32>,
    return
  }
  func.func @transform_0(%arg0: i32, %arg1: memref<50xf32, #tpu.memory_space<smem>>, %arg2: memref<1xf32, #tpu.memory_space<smem>>) -> (i32, i32, i32, i32) {
    %c0_i32 = arith.constant 0 : i32
    %c0_i32_0 = arith.constant 0 : i32
    %c0_i32_1 = arith.constant 0 : i32
    %c0_i32_2 = arith.constant 0 : i32
    return %arg0, %c0_i32, %c0_i32_0, %c0_i32_1 : i32, i32, i32, i32
  }
  func.func @transform_1(%arg0: i32, %arg1: memref<50xf32, #tpu.memory_space<smem>>, %arg2: memref<1xf32, #tpu.memory_space<smem>>) -> (i32, i32, i32, i32) {
    %c0_i32 = arith.constant 0 : i32
    %c0_i32_0 = arith.constant 0 : i32
    %c0_i32_1 = arith.constant 0 : i32
    %c0_i32_2 = arith.constant 0 : i32
    return %arg0, %c0_i32, %c0_i32_0, %c0_i32_1 : i32, i32, i32, i32
  }
}

</mosaic_0001>

<llo_original>
// kernel: tpu_custom_call.1
$region0: #{tpu_custom_call.1}
  #allocation0 [shape = 'u32[]', space=smem, size = 0x4, offset = 0x4, fixed_abs, tag = 'smem constant byte address 0x4 - core index']
  #allocation1 [shape = 'u32[144,128]{1,0:T(1,128)}', space=vmem, size = 0x12000, scoped, tag = 'internal scratch']
  #allocation2 [shape = 'f32[20,128]{1,0:T(8,128)}', space=vmem, size = 0x3000, scoped, tag = 'scratch operand']
  #allocation3 [shape = 'f32[20,128]{1,0:T(8,128)}', space=vmem, size = 0x3000, scoped, tag = 'scratch operand']
  #allocation4 [shape = 's32[1]{0}', space=sflag, size = 0x4, scoped, tag = 'scoped memory for tpu_custom_call.1']
  #allocation5 [shape = 'u8[512]{0}', space=smem, size = 0x200, scoped, tag = 'prefetched SMEM operand 0']
  #allocation6 [shape = 'f32[1]{0:T(128)S(6)}', space=smem, size = 0x200, scoped, tag = 'prefetched SMEM operand 1']
  %s0 = inlined_call_operand.vmem [shape: f32[50], index: 0, kind: input, shape index: {}]
  %s1 = inlined_call_operand.<no memory space> [shape: f32[1], index: 1, kind: input, shape index: {}]
  %s2 = inlined_call_operand.hbm [shape: f32[2,4,16,16], index: 2, kind: input, shape index: {}]
  %s3 = inlined_call_operand.hbm [shape: f32[2,4,16,16], index: 3, kind: output, shape index: {}]
  %s4 = sld [smem:[#allocation0]]
  $region41: #{tpu_custom_call.1} parent=0
    _
  %s6 = ssub.s32 1, %s4
  %s7 = scalar_select 0, %s6, %s4
  %s8 = sshll.u32 %s0, 4
  %s9 = int_to_ptr.vmem [resolvable:$true] %s8
  %11 = dma.vmem_to_smem %s9, 16, [#allocation5], [#allocation4]
  %12 = sst [smem:[#allocation6]] %s1
  %13 = dma.done [#allocation4], 16
  %14 = sfence
  $region1: #{tpu_custom_call.1} parent=0
    #allocation7 [shape = 'u8[65536]{0}', space=vmem, size = 0x10000, scoped, tag = 'input window, operand 2']
    #allocation8 [shape = 's32[2]{0}', space=sflag, size = 0x8, scoped, tag = 'scoped memory for tpu_custom_call.1']
    #allocation9 [shape = 's32[2]{0}', space=sflag, size = 0x8, scoped, tag = 'scoped memory for tpu_custom_call.1']
    #allocation10 [shape = 'u8[65536]{0}', space=vmem, size = 0x10000, scoped, tag = 'output window, operand 0']
    %15 = vsyncpa [#allocation8], 0
    %s16 = scalar_lea.sflag [#allocation8], 1
    %17 = vsyncpa %s16, 0
    %18 = vsyncpa [#allocation9], 0
    %s19 = scalar_lea.sflag [#allocation9], 1
    %20 = vsyncpa %s19, 0
    loop: start=0, step=1, limit=4
    $region2: #{tpu_custom_call.1} parent=1 // loop_pre_header
      _
    $region3: #{tpu_custom_call.1} parent=1 // loop_header
      %s22 = sphi 0, %s26
      %p23 = scmp.ge.s32.totalorder %s22, 4
      %s32 = sphi 0, %s34
      %s35 = sphi 0, %s32
      %s36 = sphi 0, %s35
      %s52 = sphi 0, %s36
      %s58 = sphi 0, %s60
      %s61 = sphi 0, %s58
      %s62 = sphi 0, %s61
      %s78 = sphi 0, %s62
    $region4: #{tpu_custom_call.1} parent=1 // loop_header_branch
      %25 = sbr.rel (%p23) target = $region8
    $region5: #{tpu_custom_call.1} parent=1 // loop_body
      %s27 = ssub.s32 %s22, 1
      %s28 = ssub.s32 %s22, 2
      %s29 = sadd.s32 %s22, 1
      %s30 = ssub.s32 %s22, %s29
      %p31 = scmp.eq.s32.totalorder %s30, 0
      %s33 = sadd.s32 %s32, 1
      %s34 = scalar_select %p31, %s32, %s33
      %p37 = pneg %p31
      %p38 = scmp.eq.s32.totalorder %s22, 1
      %p39 = por %p37, %p38
      %p40 = scmp.ne.s32.totalorder %s32, %s35
      %p41 = scmp.eq.s32.totalorder %s22, 0
      %p42 = por %p40, %p41
      %p43 = scmp.ne.s32.totalorder %s32, %s35
      %p44 = scmp.eq.s32.totalorder %s27, 1
      %p45 = por %p43, %p44
      %p46 = scmp.ne.s32.totalorder %s35, %s36
      %p47 = scmp.eq.s32.totalorder %s27, 0
      %p48 = por %p46, %p47
      %p49 = scmp.ne.s32.totalorder %s35, %s36
      %p50 = scmp.eq.s32.totalorder %s28, 1
      %p51 = por %p49, %p50
      %p53 = scmp.ne.s32.totalorder %s36, %s52
      %p54 = scmp.eq.s32.totalorder %s28, 0
      %p55 = por %p53, %p54
      %s56 = ssub.s32 %s22, %s29
      %p57 = scmp.eq.s32.totalorder %s56, 0
      %s59 = sadd.s32 %s58, 1
      %s60 = scalar_select %p57, %s58, %s59
      %p63 = pneg %p57
      %p64 = scmp.eq.s32.totalorder %s22, 1
      %p65 = por %p63, %p64
      %p66 = scmp.ne.s32.totalorder %s58, %s61
      %p67 = scmp.eq.s32.totalorder %s22, 0
      %p68 = por %p66, %p67
      %p69 = scmp.ne.s32.totalorder %s58, %s61
      %p70 = scmp.eq.s32.totalorder %s27, 1
      %p71 = por %p69, %p70
      %p72 = scmp.ne.s32.totalorder %s61, %s62
      %p73 = scmp.eq.s32.totalorder %s27, 0
      %p74 = por %p72, %p73
      %p75 = scmp.ne.s32.totalorder %s61, %s62
      %p76 = scmp.eq.s32.totalorder %s28, 1
      %p77 = por %p75, %p76
      %p79 = scmp.ne.s32.totalorder %s62, %s78
      %p80 = scmp.eq.s32.totalorder %s28, 0
      %p81 = por %p79, %p80
      %p82 = scmp.le.s32.totalorder 1, %s22
      %p83 = scmp.lt.s32.totalorder %s22, 3
      %p84 = pnand %p82, %p83
      %p85 = pneg %p84
      // Predicated region
      $region9: #{tpu_custom_call.1} parent=5 // pred_check
        _
      $region10: #{tpu_custom_call.1} parent=5 // pred_check_branch
        %87 = sbr.rel (%p84) target = $region12
      $region11: #{tpu_custom_call.1} parent=5 // pred_region
        %s88 = ssub.s32 %s22, 1
      $region12: #{tpu_custom_call.1} parent=5 // pred_fallthru
        _
      %p89 = scmp.lt.s32.totalorder %s22, 2
      // Predicated region
      $region13: #{tpu_custom_call.1} parent=5 // pred_check
        %p90 = pneg %p89
      $region14: #{tpu_custom_call.1} parent=5 // pred_check_branch
        %92 = sbr.rel (%p90) target = $region16
      $region15: #{tpu_custom_call.1} parent=5 // pred_region
        // Predicated region
        $region17: #{tpu_custom_call.1} parent=15 // pred_check
          %p93 = pneg %p42
        $region18: #{tpu_custom_call.1} parent=15 // pred_check_branch
          %95 = sbr.rel (%p93) target = $region20
        $region19: #{tpu_custom_call.1} parent=15 // pred_region
          %s96 = sand.u32 %s32, 1
          %s97 = scalar_lea.sflag [#allocation8], %s96
          %s98 = sand.u32 %s32, 1
          %s99 = smul.addr %s98, 64
          %s100 = scalar_lea.vmem [#allocation7], %s99
          %s102 = ssub.s32 1024, 1024
          %103 = vsyncadd %s97, %s102
          %s104 = smul.addr %s22, 8
          %s105 = smul.addr %s104, 128
          %s106 = scalar_lea.hbm %s2, %s105
          %s107 = sshll.u32 %s100, 4
          %s108 = int_to_ptr.vmem [resolvable:$true] %s107
          %113 = dma.hbm_to_vmem [thread:$0]  %s106, 1024, %s108, %s97, 128, 128, 8
        $region20: #{tpu_custom_call.1} parent=15 // pred_fallthru
          _
      $region16: #{tpu_custom_call.1} parent=5 // pred_fallthru
        _
      %p114 = scmp.le.s32.totalorder 1, %s22
      %p115 = scmp.lt.s32.totalorder %s22, 3
      %p116 = pnand %p114, %p115
      %p117 = pneg %p116
      // Predicated region
      $region21: #{tpu_custom_call.1} parent=5 // pred_check
        _
      $region22: #{tpu_custom_call.1} parent=5 // pred_check_branch
        %119 = sbr.rel (%p116) target = $region24
      $region23: #{tpu_custom_call.1} parent=5 // pred_region
        %s120 = ssub.s32 %s22, 1
        %s121 = sand.u32 %s35, 1
        %s122 = scalar_lea.sflag [#allocation8], %s121
        %s123 = sand.u32 %s35, 1
        %s124 = smul.addr %s123, 64
        %s125 = scalar_lea.vmem [#allocation7], %s124
        // Predicated region
        $region25: #{tpu_custom_call.1} parent=23 // pred_check
          %p126 = pneg %p48
        $region26: #{tpu_custom_call.1} parent=23 // pred_check_branch
          %128 = sbr.rel (%p126) target = $region28
        $region27: #{tpu_custom_call.1} parent=23 // pred_region
          %129 = dma.done %s122, 1024
        $region28: #{tpu_custom_call.1} parent=23 // pred_fallthru
          _
        %s130 = sand.u32 %s35, 1
        %s131 = scalar_lea.sflag [#allocation8], %s130
        %s132 = sand.u32 %s35, 1
        %s133 = smul.addr %s132, 64
        %s134 = scalar_lea.vmem [#allocation7], %s133
        %p135 = pneg %p48
        %p136 = pneg %p45
        %p137 = pneg %p74
        %p138 = pneg %p71
        %s139 = sand.u32 %s61, 1
        %s140 = scalar_lea.sflag [#allocation9], %s139
        %s141 = sand.u32 %s61, 1
        %s142 = smul.addr %s141, 64
        %s143 = scalar_lea.vmem [#allocation10], %s142
        %v144 = vld [vmem:[%s125] sm:$0xff]
        %v145 = vld [vmem:[%s125 + $0x8] sm:$0xff]
        %s146 = scalar_lea.vmem %s125, 16 [#allocation7]
        %v147 = vld [vmem:[%s146] sm:$0xff]
        %v148 = vld [vmem:[%s146 + $0x8] sm:$0xff]
        %v149 = vmax.f32 %v144, %v147
        %v150 = vmax.f32 %v145, %v148
        %v151 = vadd.f32 %v144, %v147
        %v152 = vadd.f32 %v145, %v148
        %s153 = scalar_lea.vmem %s125, 32 [#allocation7]
        %v154 = vld [vmem:[%s153] sm:$0xff]
        %v155 = vld [vmem:[%s153 + $0x8] sm:$0xff]
        %v156 = vmax.f32 %v149, %v154
        %v157 = vmax.f32 %v150, %v155
        %v158 = vadd.f32 %v151, %v154
        %v159 = vadd.f32 %v152, %v155
        %s160 = scalar_lea.vmem %s125, 48 [#allocation7]
        %v161 = vld [vmem:[%s160] sm:$0xff]
        %v162 = vld [vmem:[%s160 + $0x8] sm:$0xff]
        %v163 = vmax.f32 %v156, %v161
        %v164 = vmax.f32 %v157, %v162
        %v165 = vadd.f32 %v158, %v161
        %v166 = vadd.f32 %v159, %v162
        %v167 = vmul.f32 %v165, 0.25
        %v168 = vmul.f32 %v166, 0.25
        %169 = vst [vmem:[#allocation2] sm:$0xff] 0.0
        %170 = vst [vmem:[#allocation2 + $0x8] sm:$0xff] 0.0
        %171 = vst [vmem:[#allocation2 + $0x10] sm:$0xf] 0.0
        %172 = vst [vmem:[#allocation3] sm:$0xff] 0.0
        %173 = vst [vmem:[#allocation3 + $0x8] sm:$0xff] 0.0
        %174 = vst [vmem:[#allocation3 + $0x10] sm:$0xf] 0.0
        %177 = vrot.lane.b32.xlu0 %v163, 2
        %v178 = vpop.permute.xlu0 %177
        %179 = vrot.lane.b32.xlu0 %v164, 2
        %v180 = vpop.permute.xlu0 %179
        %vm183 = vcmask 146448
        %184 = vst.msk [vmem:[#allocation2 + $0x2] sm:$0xff] %vm183, %v178
        %185 = vst.msk [vmem:[#allocation2 + $0xa] sm:$0xff] %vm183, %v180
        %188 = vrot.lane.b32.xlu0 %v167, 2
        %v189 = vpop.permute.xlu0 %188
        %190 = vrot.lane.b32.xlu0 %v168, 2
        %v191 = vpop.permute.xlu0 %190
        %194 = vst.msk [vmem:[#allocation3 + $0x2] sm:$0xff] %vm183, %v189
        %195 = vst.msk [vmem:[#allocation3 + $0xa] sm:$0xff] %vm183, %v191
        %s196 = sld [smem:[#allocation6]]
        %v197 = vstv %s196
        %s198 = sld [smem:[#allocation5]]
        %s199 = sld [smem:[#allocation5 + $0x19]]
        %v200 = vld [vmem:[#allocation2] sm:$0xff]
        %v201 = vld [vmem:[#allocation2 + $0x8] sm:$0xff]
        %v202 = vstv %s198
        %v203 = vmul.f32 %v202, %v200
        %v204 = vmul.f32 %v202, %v201
        %v205 = vadd.f32 %v197, %v203
        %v206 = vadd.f32 %v197, %v204
        %v207 = vld [vmem:[#allocation3] sm:$0xff]
        %v208 = vld [vmem:[#allocation3 + $0x8] sm:$0xff]
        %v209 = vstv %s199
        %v210 = vmul.f32 %v209, %v207
        %v211 = vmul.f32 %v209, %v208
        %v212 = vadd.f32 %v205, %v210
        %v213 = vadd.f32 %v206, %v211
        %s214 = sld [smem:[#allocation5 + $0x1]]
        %s215 = sld [smem:[#allocation5 + $0x1a]]
        %v216 = vstv %s214
        %v217 = vmul.f32 %v216, %v200
        %v218 = vmul.f32 %v216, %v201
        %221 = vrot.lane.b32.xlu0 %v217, 127
        %v222 = vpop.permute.xlu0 %221
        %223 = vrot.lane.b32.xlu0 %v218, 127
        %v224 = vpop.permute.xlu0 %223
        %v227 = vadd.f32 %v212, %v222
        %v228 = vadd.f32 %v213, %v224
        %v229 = vstv %s215
        %v230 = vmul.f32 %v229, %v207
        %v231 = vmul.f32 %v229, %v208
        %234 = vrot.lane.b32.xlu0 %v230, 127
        %v235 = vpop.permute.xlu0 %234
        %236 = vrot.lane.b32.xlu0 %v231, 127
        %v237 = vpop.permute.xlu0 %236
        %v240 = vadd.f32 %v227, %v235
        %v241 = vadd.f32 %v228, %v237
        %s242 = sld [smem:[#allocation5 + $0x2]]
        %s243 = sld [smem:[#allocation5 + $0x1b]]
        %v244 = vstv %s242
        %v245 = vmul.f32 %v244, %v200
        %v246 = vmul.f32 %v244, %v201
        %249 = vrot.lane.b32.xlu0 %v245, 126
        %v250 = vpop.permute.xlu0 %249
        %251 = vrot.lane.b32.xlu0 %v246, 126
        %v252 = vpop.permute.xlu0 %251
        %v255 = vadd.f32 %v240, %v250
        %v256 = vadd.f32 %v241, %v252
        %v257 = vstv %s243
        %v258 = vmul.f32 %v257, %v207
        %v259 = vmul.f32 %v257, %v208
        %262 = vrot.lane.b32.xlu0 %v258, 126
        %v263 = vpop.permute.xlu0 %262
        %264 = vrot.lane.b32.xlu0 %v259, 126
        %v265 = vpop.permute.xlu0 %264
        %v268 = vadd.f32 %v255, %v263
        %v269 = vadd.f32 %v256, %v265
        %s270 = sld [smem:[#allocation5 + $0x3]]
        %s271 = sld [smem:[#allocation5 + $0x1c]]
        %v272 = vstv %s270
        %v273 = vmul.f32 %v272, %v200
        %v274 = vmul.f32 %v272, %v201
        %277 = vrot.lane.b32.xlu0 %v273, 125
        %v278 = vpop.permute.xlu0 %277
        %279 = vrot.lane.b32.xlu0 %v274, 125
        %v280 = vpop.permute.xlu0 %279
        %v283 = vadd.f32 %v268, %v278
        %v284 = vadd.f32 %v269, %v280
        %v285 = vstv %s271
        %v286 = vmul.f32 %v285, %v207
        %v287 = vmul.f32 %v285, %v208
        %290 = vrot.lane.b32.xlu0 %v286, 125
        %v291 = vpop.permute.xlu0 %290
        %292 = vrot.lane.b32.xlu0 %v287, 125
        %v293 = vpop.permute.xlu0 %292
        %v296 = vadd.f32 %v283, %v291
        %v297 = vadd.f32 %v284, %v293
        %s298 = sld [smem:[#allocation5 + $0x4]]
        %s299 = sld [smem:[#allocation5 + $0x1d]]
        %v300 = vstv %s298
        %v301 = vmul.f32 %v300, %v200
        %v302 = vmul.f32 %v300, %v201
        %305 = vrot.lane.b32.xlu0 %v301, 124
        %v306 = vpop.permute.xlu0 %305
        %307 = vrot.lane.b32.xlu0 %v302, 124
        %v308 = vpop.permute.xlu0 %307
        %v311 = vadd.f32 %v296, %v306
        %v312 = vadd.f32 %v297, %v308
        %v313 = vstv %s299
        %v314 = vmul.f32 %v313, %v207
        %v315 = vmul.f32 %v313, %v208
        %318 = vrot.lane.b32.xlu0 %v314, 124
        %v319 = vpop.permute.xlu0 %318
        %320 = vrot.lane.b32.xlu0 %v315, 124
        %v321 = vpop.permute.xlu0 %320
        %v324 = vadd.f32 %v311, %v319
        %v325 = vadd.f32 %v312, %v321
        %s326 = sld [smem:[#allocation5 + $0x5]]
        %s327 = sld [smem:[#allocation5 + $0x1e]]
        %v328 = vld [vmem:[#allocation2 + $0x1] sm:$0xff]
        %v329 = vld [vmem:[#allocation2 + $0x9] sm:$0xff]
        %v330 = vstv %s326
        %v331 = vmul.f32 %v330, %v328
        %v332 = vmul.f32 %v330, %v329
        %v333 = vadd.f32 %v324, %v331
        %v334 = vadd.f32 %v325, %v332
        %v335 = vld [vmem:[#allocation3 + $0x1] sm:$0xff]
        %v336 = vld [vmem:[#allocation3 + $0x9] sm:$0xff]
        %v337 = vstv %s327
        %v338 = vmul.f32 %v337, %v335
        %v339 = vmul.f32 %v337, %v336
        %v340 = vadd.f32 %v333, %v338
        %v341 = vadd.f32 %v334, %v339
        %s342 = sld [smem:[#allocation5 + $0x6]]
        %s343 = sld [smem:[#allocation5 + $0x1f]]
        %v344 = vstv %s342
        %v345 = vmul.f32 %v344, %v328
        %v346 = vmul.f32 %v344, %v329
        %349 = vrot.lane.b32.xlu0 %v345, 127
        %v350 = vpop.permute.xlu0 %349
        %351 = vrot.lane.b32.xlu0 %v346, 127
        %v352 = vpop.permute.xlu0 %351
        %v355 = vadd.f32 %v340, %v350
        %v356 = vadd.f32 %v341, %v352
        %v357 = vstv %s343
        %v358 = vmul.f32 %v357, %v335
        %v359 = vmul.f32 %v357, %v336
        %362 = vrot.lane.b32.xlu0 %v358, 127
        %v363 = vpop.permute.xlu0 %362
        %364 = vrot.lane.b32.xlu0 %v359, 127
        %v365 = vpop.permute.xlu0 %364
        %v368 = vadd.f32 %v355, %v363
        %v369 = vadd.f32 %v356, %v365
        %s370 = sld [smem:[#allocation5 + $0x7]]
        %s371 = sld [smem:[#allocation5 + $0x20]]
        %v372 = vstv %s370
        %v373 = vmul.f32 %v372, %v328
        %v374 = vmul.f32 %v372, %v329
        %377 = vrot.lane.b32.xlu0 %v373, 126
        %v378 = vpop.permute.xlu0 %377
        %379 = vrot.lane.b32.xlu0 %v374, 126
        %v380 = vpop.permute.xlu0 %379
        %v383 = vadd.f32 %v368, %v378
        %v384 = vadd.f32 %v369, %v380
        %v385 = vstv %s371
        %v386 = vmul.f32 %v385, %v335
        %v387 = vmul.f32 %v385, %v336
        %390 = vrot.lane.b32.xlu0 %v386, 126
        %v391 = vpop.permute.xlu0 %390
        %392 = vrot.lane.b32.xlu0 %v387, 126
        %v393 = vpop.permute.xlu0 %392
        %v396 = vadd.f32 %v383, %v391
        %v397 = vadd.f32 %v384, %v393
        %s398 = sld [smem:[#allocation5 + $0x8]]
        %s399 = sld [smem:[#allocation5 + $0x21]]
        %v400 = vstv %s398
        %v401 = vmul.f32 %v400, %v328
        %v402 = vmul.f32 %v400, %v329
        %405 = vrot.lane.b32.xlu0 %v401, 125
        %v406 = vpop.permute.xlu0 %405
        %407 = vrot.lane.b32.xlu0 %v402, 125
        %v408 = vpop.permute.xlu0 %407
        %v411 = vadd.f32 %v396, %v406
        %v412 = vadd.f32 %v397, %v408
        %v413 = vstv %s399
        %v414 = vmul.f32 %v413, %v335
        %v415 = vmul.f32 %v413, %v336
        %418 = vrot.lane.b32.xlu0 %v414, 125
        %v419 = vpop.permute.xlu0 %418
        %420 = vrot.lane.b32.xlu0 %v415, 125
        %v421 = vpop.permute.xlu0 %420
        %v424 = vadd.f32 %v411, %v419
        %v425 = vadd.f32 %v412, %v421
        %s426 = sld [smem:[#allocation5 + $0x9]]
        %s427 = sld [smem:[#allocation5 + $0x22]]
        %v428 = vstv %s426
        %v429 = vmul.f32 %v428, %v328
        %v430 = vmul.f32 %v428, %v329
        %433 = vrot.lane.b32.xlu0 %v429, 124
        %v434 = vpop.permute.xlu0 %433
        %435 = vrot.lane.b32.xlu0 %v430, 124
        %v436 = vpop.permute.xlu0 %435
        %v439 = vadd.f32 %v424, %v434
        %v440 = vadd.f32 %v425, %v436
        %v441 = vstv %s427
        %v442 = vmul.f32 %v441, %v335
        %v443 = vmul.f32 %v441, %v336
        %446 = vrot.lane.b32.xlu0 %v442, 124
        %v447 = vpop.permute.xlu0 %446
        %448 = vrot.lane.b32.xlu0 %v443, 124
        %v449 = vpop.permute.xlu0 %448
        %v452 = vadd.f32 %v439, %v447
        %v453 = vadd.f32 %v440, %v449
        %s454 = sld [smem:[#allocation5 + $0xa]]
        %s455 = sld [smem:[#allocation5 + $0x23]]
        %v456 = vld [vmem:[#allocation2 + $0x2] sm:$0xff]
        %v457 = vld [vmem:[#allocation2 + $0xa] sm:$0xff]
        %v458 = vstv %s454
        %v459 = vmul.f32 %v458, %v456
        %v460 = vmul.f32 %v458, %v457
        %v461 = vadd.f32 %v452, %v459
        %v462 = vadd.f32 %v453, %v460
        %v463 = vld [vmem:[#allocation3 + $0x2] sm:$0xff]
        %v464 = vld [vmem:[#allocation3 + $0xa] sm:$0xff]
        %v465 = vstv %s455
        %v466 = vmul.f32 %v465, %v463
        %v467 = vmul.f32 %v465, %v464
        %v468 = vadd.f32 %v461, %v466
        %v469 = vadd.f32 %v462, %v467
        %s470 = sld [smem:[#allocation5 + $0xb]]
        %s471 = sld [smem:[#allocation5 + $0x24]]
        %v472 = vstv %s470
        %v473 = vmul.f32 %v472, %v456
        %v474 = vmul.f32 %v472, %v457
        %477 = vrot.lane.b32.xlu0 %v473, 127
        %v478 = vpop.permute.xlu0 %477
        %479 = vrot.lane.b32.xlu0 %v474, 127
        %v480 = vpop.permute.xlu0 %479
        %v483 = vadd.f32 %v468, %v478
        %v484 = vadd.f32 %v469, %v480
        %v485 = vstv %s471
        %v486 = vmul.f32 %v485, %v463
        %v487 = vmul.f32 %v485, %v464
        %490 = vrot.lane.b32.xlu0 %v486, 127
        %v491 = vpop.permute.xlu0 %490
        %492 = vrot.lane.b32.xlu0 %v487, 127
        %v493 = vpop.permute.xlu0 %492
        %v496 = vadd.f32 %v483, %v491
        %v497 = vadd.f32 %v484, %v493
        %s498 = sld [smem:[#allocation5 + $0xc]]
        %s499 = sld [smem:[#allocation5 + $0x25]]
        %v500 = vstv %s498
        %v501 = vmul.f32 %v500, %v456
        %v502 = vmul.f32 %v500, %v457
        %505 = vrot.lane.b32.xlu0 %v501, 126
        %v506 = vpop.permute.xlu0 %505
        %507 = vrot.lane.b32.xlu0 %v502, 126
        %v508 = vpop.permute.xlu0 %507
        %v511 = vadd.f32 %v496, %v506
        %v512 = vadd.f32 %v497, %v508
        %v513 = vstv %s499
        %v514 = vmul.f32 %v513, %v463
        %v515 = vmul.f32 %v513, %v464
        %518 = vrot.lane.b32.xlu0 %v514, 126
        %v519 = vpop.permute.xlu0 %518
        %520 = vrot.lane.b32.xlu0 %v515, 126
        %v521 = vpop.permute.xlu0 %520
        %v524 = vadd.f32 %v511, %v519
        %v525 = vadd.f32 %v512, %v521
        %s526 = sld [smem:[#allocation5 + $0xd]]
        %s527 = sld [smem:[#allocation5 + $0x26]]
        %v528 = vstv %s526
        %v529 = vmul.f32 %v528, %v456
        %v530 = vmul.f32 %v528, %v457
        %533 = vrot.lane.b32.xlu0 %v529, 125
        %v534 = vpop.permute.xlu0 %533
        %535 = vrot.lane.b32.xlu0 %v530, 125
        %v536 = vpop.permute.xlu0 %535
        %v539 = vadd.f32 %v524, %v534
        %v540 = vadd.f32 %v525, %v536
        %v541 = vstv %s527
        %v542 = vmul.f32 %v541, %v463
        %v543 = vmul.f32 %v541, %v464
        %546 = vrot.lane.b32.xlu0 %v542, 125
        %v547 = vpop.permute.xlu0 %546
        %548 = vrot.lane.b32.xlu0 %v543, 125
        %v549 = vpop.permute.xlu0 %548
        %v552 = vadd.f32 %v539, %v547
        %v553 = vadd.f32 %v540, %v549
        %s554 = sld [smem:[#allocation5 + $0xe]]
        %s555 = sld [smem:[#allocation5 + $0x27]]
        %v556 = vstv %s554
        %v557 = vmul.f32 %v556, %v456
        %v558 = vmul.f32 %v556, %v457
        %561 = vrot.lane.b32.xlu0 %v557, 124
        %v562 = vpop.permute.xlu0 %561
        %563 = vrot.lane.b32.xlu0 %v558, 124
        %v564 = vpop.permute.xlu0 %563
        %v567 = vadd.f32 %v552, %v562
        %v568 = vadd.f32 %v553, %v564
        %v569 = vstv %s555
        %v570 = vmul.f32 %v569, %v463
        %v571 = vmul.f32 %v569, %v464
        %574 = vrot.lane.b32.xlu0 %v570, 124
        %v575 = vpop.permute.xlu0 %574
        %576 = vrot.lane.b32.xlu0 %v571, 124
        %v577 = vpop.permute.xlu0 %576
        %v580 = vadd.f32 %v567, %v575
        %v581 = vadd.f32 %v568, %v577
        %s582 = sld [smem:[#allocation5 + $0xf]]
        %s583 = sld [smem:[#allocation5 + $0x28]]
        %v584 = vld [vmem:[#allocation2 + $0x3] sm:$0xff]
        %v585 = vld [vmem:[#allocation2 + $0xb] sm:$0xff]
        %v586 = vstv %s582
        %v587 = vmul.f32 %v586, %v584
        %v588 = vmul.f32 %v586, %v585
        %v589 = vadd.f32 %v580, %v587
        %v590 = vadd.f32 %v581, %v588
        %v591 = vld [vmem:[#allocation3 + $0x3] sm:$0xff]
        %v592 = vld [vmem:[#allocation3 + $0xb] sm:$0xff]
        %v593 = vstv %s583
        %v594 = vmul.f32 %v593, %v591
        %v595 = vmul.f32 %v593, %v592
        %v596 = vadd.f32 %v589, %v594
        %v597 = vadd.f32 %v590, %v595
        %s598 = sld [smem:[#allocation5 + $0x10]]
        %s599 = sld [smem:[#allocation5 + $0x29]]
        %v600 = vstv %s598
        %v601 = vmul.f32 %v600, %v584
        %v602 = vmul.f32 %v600, %v585
        %605 = vrot.lane.b32.xlu0 %v601, 127
        %v606 = vpop.permute.xlu0 %605
        %607 = vrot.lane.b32.xlu0 %v602, 127
        %v608 = vpop.permute.xlu0 %607
        %v611 = vadd.f32 %v596, %v606
        %v612 = vadd.f32 %v597, %v608
        %v613 = vstv %s599
        %v614 = vmul.f32 %v613, %v591
        %v615 = vmul.f32 %v613, %v592
        %618 = vrot.lane.b32.xlu0 %v614, 127
        %v619 = vpop.permute.xlu0 %618
        %620 = vrot.lane.b32.xlu0 %v615, 127
        %v621 = vpop.permute.xlu0 %620
        %v624 = vadd.f32 %v611, %v619
        %v625 = vadd.f32 %v612, %v621
        %s626 = sld [smem:[#allocation5 + $0x11]]
        %s627 = sld [smem:[#allocation5 + $0x2a]]
        %v628 = vstv %s626
        %v629 = vmul.f32 %v628, %v584
        %v630 = vmul.f32 %v628, %v585
        %633 = vrot.lane.b32.xlu0 %v629, 126
        %v634 = vpop.permute.xlu0 %633
        %635 = vrot.lane.b32.xlu0 %v630, 126
        %v636 = vpop.permute.xlu0 %635
        %v639 = vadd.f32 %v624, %v634
        %v640 = vadd.f32 %v625, %v636
        %v641 = vstv %s627
        %v642 = vmul.f32 %v641, %v591
        %v643 = vmul.f32 %v641, %v592
        %646 = vrot.lane.b32.xlu0 %v642, 126
        %v647 = vpop.permute.xlu0 %646
        %648 = vrot.lane.b32.xlu0 %v643, 126
        %v649 = vpop.permute.xlu0 %648
        %v652 = vadd.f32 %v639, %v647
        %v653 = vadd.f32 %v640, %v649
        %s654 = sld [smem:[#allocation5 + $0x12]]
        %s655 = sld [smem:[#allocation5 + $0x2b]]
        %v656 = vstv %s654
        %v657 = vmul.f32 %v656, %v584
        %v658 = vmul.f32 %v656, %v585
        %661 = vrot.lane.b32.xlu0 %v657, 125
        %v662 = vpop.permute.xlu0 %661
        %663 = vrot.lane.b32.xlu0 %v658, 125
        %v664 = vpop.permute.xlu0 %663
        %v667 = vadd.f32 %v652, %v662
        %v668 = vadd.f32 %v653, %v664
        %v669 = vstv %s655
        %v670 = vmul.f32 %v669, %v591
        %v671 = vmul.f32 %v669, %v592
        %674 = vrot.lane.b32.xlu0 %v670, 125
        %v675 = vpop.permute.xlu0 %674
        %676 = vrot.lane.b32.xlu0 %v671, 125
        %v677 = vpop.permute.xlu0 %676
        %v680 = vadd.f32 %v667, %v675
        %v681 = vadd.f32 %v668, %v677
        %s682 = sld [smem:[#allocation5 + $0x13]]
        %s683 = sld [smem:[#allocation5 + $0x2c]]
        %v684 = vstv %s682
        %v685 = vmul.f32 %v684, %v584
        %v686 = vmul.f32 %v684, %v585
        %689 = vrot.lane.b32.xlu0 %v685, 124
        %v690 = vpop.permute.xlu0 %689
        %691 = vrot.lane.b32.xlu0 %v686, 124
        %v692 = vpop.permute.xlu0 %691
        %v695 = vadd.f32 %v680, %v690
        %v696 = vadd.f32 %v681, %v692
        %v697 = vstv %s683
        %v698 = vmul.f32 %v697, %v591
        %v699 = vmul.f32 %v697, %v592
        %702 = vrot.lane.b32.xlu0 %v698, 124
        %v703 = vpop.permute.xlu0 %702
        %704 = vrot.lane.b32.xlu0 %v699, 124
        %v705 = vpop.permute.xlu0 %704
        %v708 = vadd.f32 %v695, %v703
        %v709 = vadd.f32 %v696, %v705
        %s710 = sld [smem:[#allocation5 + $0x14]]
        %s711 = sld [smem:[#allocation5 + $0x2d]]
        %v712 = vld [vmem:[#allocation2 + $0x4] sm:$0xff]
        %v713 = vld [vmem:[#allocation2 + $0xc] sm:$0xff]
        %v714 = vstv %s710
        %v715 = vmul.f32 %v714, %v712
        %v716 = vmul.f32 %v714, %v713
        %v717 = vadd.f32 %v708, %v715
        %v718 = vadd.f32 %v709, %v716
        %v719 = vld [vmem:[#allocation3 + $0x4] sm:$0xff]
        %v720 = vld [vmem:[#allocation3 + $0xc] sm:$0xff]
        %v721 = vstv %s711
        %v722 = vmul.f32 %v721, %v719
        %v723 = vmul.f32 %v721, %v720
        %v724 = vadd.f32 %v717, %v722
        %v725 = vadd.f32 %v718, %v723
        %s726 = sld [smem:[#allocation5 + $0x15]]
        %s727 = sld [smem:[#allocation5 + $0x2e]]
        %v728 = vstv %s726
        %v729 = vmul.f32 %v728, %v712
        %v730 = vmul.f32 %v728, %v713
        %733 = vrot.lane.b32.xlu0 %v729, 127
        %v734 = vpop.permute.xlu0 %733
        %735 = vrot.lane.b32.xlu0 %v730, 127
        %v736 = vpop.permute.xlu0 %735
        %v739 = vadd.f32 %v724, %v734
        %v740 = vadd.f32 %v725, %v736
        %v741 = vstv %s727
        %v742 = vmul.f32 %v741, %v719
        %v743 = vmul.f32 %v741, %v720
        %746 = vrot.lane.b32.xlu0 %v742, 127
        %v747 = vpop.permute.xlu0 %746
        %748 = vrot.lane.b32.xlu0 %v743, 127
        %v749 = vpop.permute.xlu0 %748
        %v752 = vadd.f32 %v739, %v747
        %v753 = vadd.f32 %v740, %v749
        %s754 = sld [smem:[#allocation5 + $0x16]]
        %s755 = sld [smem:[#allocation5 + $0x2f]]
        %v756 = vstv %s754
        %v757 = vmul.f32 %v756, %v712
        %v758 = vmul.f32 %v756, %v713
        %761 = vrot.lane.b32.xlu0 %v757, 126
        %v762 = vpop.permute.xlu0 %761
        %763 = vrot.lane.b32.xlu0 %v758, 126
        %v764 = vpop.permute.xlu0 %763
        %v767 = vadd.f32 %v752, %v762
        %v768 = vadd.f32 %v753, %v764
        %v769 = vstv %s755
        %v770 = vmul.f32 %v769, %v719
        %v771 = vmul.f32 %v769, %v720
        %774 = vrot.lane.b32.xlu0 %v770, 126
        %v775 = vpop.permute.xlu0 %774
        %776 = vrot.lane.b32.xlu0 %v771, 126
        %v777 = vpop.permute.xlu0 %776
        %v780 = vadd.f32 %v767, %v775
        %v781 = vadd.f32 %v768, %v777
        %s782 = sld [smem:[#allocation5 + $0x17]]
        %s783 = sld [smem:[#allocation5 + $0x30]]
        %v784 = vstv %s782
        %v785 = vmul.f32 %v784, %v712
        %v786 = vmul.f32 %v784, %v713
        %789 = vrot.lane.b32.xlu0 %v785, 125
        %v790 = vpop.permute.xlu0 %789
        %791 = vrot.lane.b32.xlu0 %v786, 125
        %v792 = vpop.permute.xlu0 %791
        %v795 = vadd.f32 %v780, %v790
        %v796 = vadd.f32 %v781, %v792
        %v797 = vstv %s783
        %v798 = vmul.f32 %v797, %v719
        %v799 = vmul.f32 %v797, %v720
        %802 = vrot.lane.b32.xlu0 %v798, 125
        %v803 = vpop.permute.xlu0 %802
        %804 = vrot.lane.b32.xlu0 %v799, 125
        %v805 = vpop.permute.xlu0 %804
        %v808 = vadd.f32 %v795, %v803
        %v809 = vadd.f32 %v796, %v805
        %s810 = sld [smem:[#allocation5 + $0x18]]
        %s811 = sld [smem:[#allocation5 + $0x31]]
        %v812 = vstv %s810
        %v813 = vmul.f32 %v812, %v712
        %v814 = vmul.f32 %v812, %v713
        %817 = vrot.lane.b32.xlu0 %v813, 124
        %v818 = vpop.permute.xlu0 %817
        %819 = vrot.lane.b32.xlu0 %v814, 124
        %v820 = vpop.permute.xlu0 %819
        %v823 = vadd.f32 %v808, %v818
        %v824 = vadd.f32 %v809, %v820
        %v825 = vstv %s811
        %v826 = vmul.f32 %v825, %v719
        %v827 = vmul.f32 %v825, %v720
        %830 = vrot.lane.b32.xlu0 %v826, 124
        %v831 = vpop.permute.xlu0 %830
        %832 = vrot.lane.b32.xlu0 %v827, 124
        %v833 = vpop.permute.xlu0 %832
        %v836 = vadd.f32 %v823, %v831
        %v837 = vadd.f32 %v824, %v833
        %v838 = vmul.f32 %v836, 0.5
        %v839 = vmul.f32 %v837, 0.5
        %v840 = vtanh.pop %v838
        %v841 = vtanh.pop %v839
        %v842 = vmul.f32 %v840, 0.5
        %v843 = vmul.f32 %v841, 0.5
        %v844 = vadd.f32 %v842, 0.5
        %v845 = vadd.f32 %v843, 0.5
        %v846 = vld [vmem:[%s125] sm:$0xff]
        %v847 = vld [vmem:[%s125 + $0x8] sm:$0xff]
        %v848 = vmul.f32 %v846, %v844
        %v849 = vmul.f32 %v847, %v845
        %vm850 = vcmask 130048
        %851 = vst.msk [vmem:[%s143] sm:$0xff] %vm850, %v848
        %852 = vst.msk [vmem:[%s143 + $0x8] sm:$0xff] %vm850, %v849
        %v853 = vld [vmem:[%s146] sm:$0xff]
        %v854 = vld [vmem:[%s146 + $0x8] sm:$0xff]
        %v855 = vmul.f32 %v853, %v844
        %v856 = vmul.f32 %v854, %v845
        %s857 = scalar_lea.vmem %s143, 16 [#allocation10]
        %858 = vst.msk [vmem:[%s857] sm:$0xff] %vm850, %v855
        %859 = vst.msk [vmem:[%s857 + $0x8] sm:$0xff] %vm850, %v856
        %v860 = vld [vmem:[%s153] sm:$0xff]
        %v861 = vld [vmem:[%s153 + $0x8] sm:$0xff]
        %v862 = vmul.f32 %v860, %v844
        %v863 = vmul.f32 %v861, %v845
        %s864 = scalar_lea.vmem %s143, 32 [#allocation10]
        %865 = vst.msk [vmem:[%s864] sm:$0xff] %vm850, %v862
        %866 = vst.msk [vmem:[%s864 + $0x8] sm:$0xff] %vm850, %v863
        %v867 = vld [vmem:[%s160] sm:$0xff]
        %v868 = vld [vmem:[%s160 + $0x8] sm:$0xff]
        %v869 = vmul.f32 %v867, %v844
        %v870 = vmul.f32 %v868, %v845
        %s871 = scalar_lea.vmem %s143, 48 [#allocation10]
        %872 = vst.msk [vmem:[%s871] sm:$0xff] %vm850, %v869
        %873 = vst.msk [vmem:[%s871 + $0x8] sm:$0xff] %vm850, %v870
        %s874 = sand.u32 %s61, 1
        %s875 = scalar_lea.sflag [#allocation9], %s874
        %s876 = sand.u32 %s61, 1
        %s877 = smul.addr %s876, 64
        %s878 = scalar_lea.vmem [#allocation10], %s877
        // Predicated region
        $region29: #{tpu_custom_call.1} parent=23 // pred_check
          %p879 = pneg %p71
        $region30: #{tpu_custom_call.1} parent=23 // pred_check_branch
          %881 = sbr.rel (%p879) target = $region32
        $region31: #{tpu_custom_call.1} parent=23 // pred_region
          %s883 = ssub.s32 1024, 1024
          %884 = vsyncadd %s875, %s883
          %s885 = smul.addr %s27, 8
          %s886 = smul.addr %s885, 128
          %s887 = scalar_lea.hbm %s3, %s886
          %s888 = sshll.u32 %s878, 4
          %s889 = int_to_ptr.vmem [resolvable:$true] %s888
          %894 = dma.vmem_to_hbm [thread:$0]  %s889, 1024, %s887, %s875, 128, 128, 8
        $region32: #{tpu_custom_call.1} parent=23 // pred_fallthru
          _
      $region24: #{tpu_custom_call.1} parent=5 // pred_fallthru
        _
      %p895 = scmp.le.s32.totalorder 2, %s22
      // Predicated region
      $region33: #{tpu_custom_call.1} parent=5 // pred_check
        %p896 = pneg %p895
      $region34: #{tpu_custom_call.1} parent=5 // pred_check_branch
        %898 = sbr.rel (%p896) target = $region36
      $region35: #{tpu_custom_call.1} parent=5 // pred_region
        %s899 = ssub.s32 %s22, 2
        // Predicated region
        $region37: #{tpu_custom_call.1} parent=35 // pred_check
          %p900 = pneg %p77
        $region38: #{tpu_custom_call.1} parent=35 // pred_check_branch
          %902 = sbr.rel (%p900) target = $region40
        $region39: #{tpu_custom_call.1} parent=35 // pred_region
          %s903 = sand.u32 %s62, 1
          %s904 = scalar_lea.sflag [#allocation9], %s903
          %s905 = sand.u32 %s62, 1
          %s906 = smul.addr %s905, 64
          %s907 = scalar_lea.vmem [#allocation10], %s906
          %908 = dma.done %s904, 1024
        $region40: #{tpu_custom_call.1} parent=35 // pred_fallthru
          _
      $region36: #{tpu_custom_call.1} parent=5 // pred_fallthru
        _
    $region6: #{tpu_custom_call.1} parent=1 // loop_footer
      %s26 = sadd.s32 1, %s22
    $region7: #{tpu_custom_call.1} parent=1 // loop_footer_branch
      %21 = sbr.rel target = $region3
    $region8: #{tpu_custom_call.1} parent=1 // loop_exit
      _
    %909 = vsyncpa [#allocation8], 1
    %s910 = scalar_lea.sflag [#allocation8], 1
    %911 = vsyncpa %s910, 1
    %912 = vsyncpa [#allocation9], 1
    %s913 = scalar_lea.sflag [#allocation9], 1
    %914 = vsyncpa %s913, 1

</llo_original>
